<compile_context>
chip_gen: v7x
topology: tpu7x:2x2x1
jax: 0.10.0
libtpu: 0.0.40
codegen_flags: <defaults>
</compile_context>

<pallas_src>
import functools

import jax
import jax.numpy as jnp
from jax import lax
from jax.experimental import pallas as pl
from jax.experimental.pallas import tpu as pltpu


def _round_up(x, m):
    return (x + m - 1) // m * m


def _row_losses(logits_ref, lab_ref, b_true, tile_idx):
    """Per-row mixup CE for one (TB, C) logits tile; rows >= b_true -> 0.

    lab_ref is one packed (TB, 3) float32 block: [y_a, y_b, lam].
    The last grid tile may overrun the true batch; its garbage rows are
    per-row independent and discarded by the final select, so inf/NaN in
    them cannot contaminate valid rows.
    """
    tb, _ = logits_ref.shape
    x = logits_ref[...].astype(jnp.float32)                          # (TB, C)

    # numerically stable logsumexp
    m = jnp.max(x, axis=-1, keepdims=True)                           # (TB, 1)
    lse = jnp.log(jnp.sum(jnp.exp(x - m), axis=-1, keepdims=True))   # (TB, 1)

    lab = lab_ref[...]                                                # (TB, 3)
    y1 = lab[:, 0:1].astype(jnp.int32)                                # (TB, 1)
    y2 = lab[:, 1:2].astype(jnp.int32)
    lam = lab[:, 2:3]

    col = lax.broadcasted_iota(jnp.int32, x.shape, 1)                 # (TB, C)
    # pick x[row, y] via select + lane reduction (no one-hot multiply tile)
    p1 = jnp.sum(jnp.where(col == y1, x, 0.0), axis=-1, keepdims=True)
    p2 = jnp.sum(jnp.where(col == y2, x, 0.0), axis=-1, keepdims=True)

    d = (m + lse) - (lam * p1 + (1.0 - lam) * p2)                     # (TB, 1)

    # mask out rows that only exist because the last tile overruns B
    row = lax.broadcasted_iota(jnp.int32, (tb, 1), 0) + tile_idx * tb
    return jnp.where(row < b_true, d, 0.0)


def _mixup_partial_sum_kernel(logits_ref, lab_ref, psum_ref, *, b_true):
    """'mean'/'sum': each tile writes its own (8,128) partial-sum block."""
    i = pl.program_id(0)
    d = _row_losses(logits_ref, lab_ref, b_true, i)                   # (TB, 1)
    s = jnp.sum(d, axis=(0, 1), keepdims=True)                        # (1, 1)
    # Lane/sublane-aligned full-block store (unmasked vst); independent
    # output blocks keep the grid axis 'parallel' (megacore-shardable).
    psum_ref[...] = jnp.broadcast_to(s, psum_ref.shape)


def _mixup_persample_kernel(logits_ref, lab_ref, d_ref, *, b_true):
    """'none': per-sample losses, independent (TB, 1) output blocks."""
    i = pl.program_id(0)
    d_ref[...] = _row_losses(logits_ref, lab_ref, b_true, i)


@functools.partial(jax.jit, static_argnames=("reduction", "tb"))
def mixup_loss(output, target, reduction="mean", tb=None):
    """JAX/Pallas equivalent of MixUpLoss(nn.CrossEntropyLoss()).forward."""
    B, C = output.shape
    itemsize = jnp.dtype(output.dtype).itemsize

    if target.ndim == 2:
        y1 = target[:, 0].astype(jnp.float32)
        y2 = target[:, 1].astype(jnp.float32)
        lam = target[:, 2].astype(jnp.float32)
    else:
        # plain cross-entropy branch: d = crit(output, target)
        y1 = target.astype(jnp.float32)
        y2 = y1
        lam = jnp.ones((B,), jnp.float32)

    # ---- batch tile: multiple of 8, sized so the f32 working copy is ~4 MiB
    # (=> double-buffered inputs + intermediates stay well under v7x's 64 MiB)
    if tb is None:
        tb = (1 << 20) // max(1, C)            # elements per row => TB*C <= 1M
        tb = max(8, min(1024, (tb // 8) * 8))
    tb = max(8, _round_up(int(tb), 8))
    tb = min(tb, _round_up(B, 8))              # never larger than padded batch
    nt = -(-B // tb)                           # grid length (ceil div)
    b_pad = nt * tb

    # Single packed side input [y_a, y_b, lam]: one small DMA per step instead
    # of three.  Padded to b_pad so label/lam stay well defined for the
    # overrun rows of the last tile.  The big logits array is NOT padded.
    labs = jnp.stack([y1, y2, lam], axis=1)    # (B, 3) f32
    if b_pad != B:
        labs = jnp.pad(labs, ((0, b_pad - B), (0, 0)))

    tile_bytes = tb * C * itemsize
    use_triple = tile_bytes < (1 << 20) and nt >= 4
    n_buf = 3 if use_triple else 2
    if use_triple:
        logits_spec = pl.BlockSpec((tb, C), lambda i: (i, 0),
                                   pipeline_mode=pl.Buffered(3))
    else:
        logits_spec = pl.BlockSpec((tb, C), lambda i: (i, 0))
    in_specs = [logits_spec, pl.BlockSpec((tb, 3), lambda i: (i, 0))]

    # explicit scoped-VMEM budget: input buffers + f32 intermediates + slack,
    # capped to stay inside v7x's 64 MiB physical VMEM.
    vmem_limit = int(min(56 << 20,
                         max(16 << 20,
                             n_buf * tile_bytes + 6 * tb * C * 4 + (2 << 20))))
    cparams = pltpu.CompilerParams(
        dimension_semantics=("parallel",),     # independent output blocks
        vmem_limit_bytes=vmem_limit)

    cost = pl.CostEstimate(
        flops=8 * B * C,
        transcendentals=B * C,
        bytes_accessed=B * C * itemsize + B * 3 * 4 + 4 * (nt * 8 * 128 + B))

    if reduction in ("mean", "sum"):
        partials = pl.pallas_call(
            functools.partial(_mixup_partial_sum_kernel, b_true=B),
            out_shape=jax.ShapeDtypeStruct((nt * 8, 128), jnp.float32),
            grid=(nt,),
            in_specs=in_specs,
            out_specs=pl.BlockSpec((8, 128), lambda i: (i, 0)),
            compiler_params=cparams,
            cost_estimate=cost,
        )(output, labs)
        # row 8*i, lane 0 holds tile i's partial sum (block is broadcast-filled)
        total = jnp.sum(partials[::8, 0])
        return total / B if reduction == "mean" else total

    # reduction == 'none': per-sample losses
    # (output is only B floats total, so the last-dim-1 store path is fine)
    d = pl.pallas_call(
        functools.partial(_mixup_persample_kernel, b_true=B),
        out_shape=jax.ShapeDtypeStruct((b_pad, 1), jnp.float32),
        grid=(nt,),
        in_specs=in_specs,
        out_specs=pl.BlockSpec((tb, 1), lambda i: (i, 0)),
        compiler_params=cparams,
        cost_estimate=cost,
    )(output, labs)
    return d[:B, 0]


def _reference(output, target, reduction="mean"):
    """Pure-JAX reference for sanity checking."""
    logp = jax.nn.log_softmax(output.astype(jnp.float32), axis=-1)

    def ce(y):
        return -jnp.take_along_axis(logp, y[:, None].astype(jnp.int32), axis=-1)[:, 0]

    if target.ndim == 2:
        lam = target[:, 2].astype(jnp.float32)
        d = ce(target[:, 0]) * lam + ce(target[:, 1]) * (1.0 - lam)
    else:
        d = ce(target)
    if reduction == "mean":
        return d.mean()
    if reduction == "sum":
        return d.sum()
    return d


if __name__ == "__main__":
    key = jax.random.PRNGKey(0)
    ks = jax.random.split(key, 10)

    # ---- case 1: small single-tile batch, f32, default TB; both target kinds
    B, C = 8, 16
    out1 = jax.random.normal(ks[0], (B, C), dtype=jnp.float32)
    ya = jax.random.randint(ks[1], (B,), 0, C)
    yb = jax.random.randint(ks[2], (B,), 0, C)
    lam = jax.random.uniform(ks[3], (B,), dtype=jnp.float32)
    tgt1 = jnp.stack([ya.astype(jnp.float32), yb.astype(jnp.float32), lam], axis=1)

    got = jax.block_until_ready(mixup_loss(out1, tgt1, reduction="mean"))
    want = _reference(out1, tgt1, "mean")
    assert jnp.allclose(got, want, atol=1e-4, rtol=1e-4), (got, want)

    got = jax.block_until_ready(mixup_loss(out1, ya, reduction="mean"))  # 1-D branch
    want = _reference(out1, ya, "mean")
    assert jnp.allclose(got, want, atol=1e-4, rtol=1e-4), (got, want)

    # ---- case 2: bf16 logits, multi-tile grid with batch overrun (B=20, TB=8)
    B2, C2 = 20, 24
    out2 = jax.random.normal(ks[4], (B2, C2), dtype=jnp.bfloat16)
    ya2 = jax.random.randint(ks[5], (B2,), 0, C2)
    yb2 = jax.random.randint(ks[6], (B2,), 0, C2)
    lam2 = jax.random.uniform(ks[7], (B2,), dtype=jnp.float32)
    tgt2 = jnp.stack([ya2.astype(jnp.float32), yb2.astype(jnp.float32), lam2], axis=1)
    for red in ("mean", "sum", "none"):
        got = jax.block_until_ready(mixup_loss(out2, tgt2, reduction=red, tb=8))
        want = _reference(out2, tgt2, red)
        assert jnp.allclose(got, want, atol=1e-4, rtol=1e-4), (red, got, want)

    # ---- case 3: longer grid exercising Buffered(3) + partial-sum blocks + overrun
    B3, C3 = 100, 32
    out3 = jax.random.normal(ks[8], (B3, C3), dtype=jnp.float32)
    ya3 = jax.random.randint(ks[9], (B3,), 0, C3)
    yb3 = jax.random.randint(ks[1], (B3,), 0, C3)
    lam3 = jax.random.uniform(ks[2], (B3,), dtype=jnp.float32)
    tgt3 = jnp.stack([ya3.astype(jnp.float32), yb3.astype(jnp.float32), lam3], axis=1)
    for red in ("mean", "sum", "none"):
        got = jax.block_until_ready(mixup_loss(out3, tgt3, reduction=red, tb=8))
        want = _reference(out3, tgt3, red)
        assert jnp.allclose(got, want, atol=1e-4, rtol=1e-4), (red, got, want)

    print("KERNEL_OK")
</pallas_src>

<mosaic_0001>
module attributes {stable_mosaic.version = 11 : i64} {
  func.func @_mixup_partial_sum_kernel(%arg0: i32, %arg1: memref<8x16xf32, #tpu.memory_space<vmem>>, %arg2: memref<8x3xf32, #tpu.memory_space<vmem>>, %arg3: memref<8x128xf32, #tpu.memory_space<vmem>>) attributes {dimension_semantics = [#tpu.dimension_semantics<parallel>], iteration_bounds = array<i64: 1>, scalar_prefetch = 0 : i64, scratch_operands = 0 : i64, tpu.core_type = #tpu.core_type<tc>, window_params = [{transform_indices = @transform_0, window_bounds = array<i64: 8, 16>}, {transform_indices = @transform_1, window_bounds = array<i64: 8, 3>}, {transform_indices = @transform_2, window_bounds = array<i64: 8, 128>}]} {
    %c0 = arith.constant 0 : index
    %c0_0 = arith.constant 0 : index
    %0 = vector.load %arg1[%c0, %c0_0] : memref<8x16xf32, #tpu.memory_space<vmem>>, vector<8x16xf32>
    %cst = arith.constant dense<0xFF800000> : vector<8xf32>
    %1 = vector.multi_reduction <maximumf>, %0, %cst [1] : vector<8x16xf32> to vector<8xf32>
    %2 = vector.shape_cast %1 : vector<8xf32> to vector<8x1xf32>
    %3 = vector.broadcast %2 : vector<8x1xf32> to vector<8x16xf32>
    %4 = arith.subf %0, %3 : vector<8x16xf32>
    %5 = math.exp %4 : vector<8x16xf32>
    %cst_1 = arith.constant dense<0.000000e+00> : vector<8xf32>
    %6 = vector.multi_reduction <add>, %5, %cst_1 [1] : vector<8x16xf32> to vector<8xf32>
    %7 = vector.shape_cast %6 : vector<8xf32> to vector<8x1xf32>
    %8 = math.log %7 : vector<8x1xf32>
    %c0_2 = arith.constant 0 : index
    %c0_3 = arith.constant 0 : index
    %9 = vector.load %arg2[%c0_2, %c0_3] : memref<8x3xf32, #tpu.memory_space<vmem>>, vector<8x3xf32>
    %10 = vector.extract_strided_slice %9 {offsets = [0, 0], sizes = [8, 1], strides = [1, 1]} : vector<8x3xf32> to vector<8x1xf32>
    %11 = arith.fptosi %10 : vector<8x1xf32> to vector<8x1xi32>
    %12 = vector.extract_strided_slice %9 {offsets = [0, 1], sizes = [8, 1], strides = [1, 1]} : vector<8x3xf32> to vector<8x1xf32>
    %13 = arith.fptosi %12 : vector<8x1xf32> to vector<8x1xi32>
    %14 = vector.extract_strided_slice %9 {offsets = [0, 2], sizes = [8, 1], strides = [1, 1]} : vector<8x3xf32> to vector<8x1xf32>
    %15 = tpu.iota {dimensions = array<i32: 1>} : vector<8x16xi32>
    %16 = vector.broadcast %11 : vector<8x1xi32> to vector<8x16xi32>
    %17 = arith.cmpi eq, %15, %16 : vector<8x16xi32>
    %cst_4 = arith.constant 0.000000e+00 : f32
    %18 = vector.broadcast %cst_4 : f32 to vector<8x16xf32>
    %19 = arith.select %17, %0, %18 : vector<8x16xi1>, vector<8x16xf32>
    %cst_5 = arith.constant dense<0.000000e+00> : vector<8xf32>
    %20 = vector.multi_reduction <add>, %19, %cst_5 [1] : vector<8x16xf32> to vector<8xf32>
    %21 = vector.shape_cast %20 : vector<8xf32> to vector<8x1xf32>
    %22 = vector.broadcast %13 : vector<8x1xi32> to vector<8x16xi32>
    %23 = arith.cmpi eq, %15, %22 : vector<8x16xi32>
    %cst_6 = arith.constant 0.000000e+00 : f32
    %24 = vector.broadcast %cst_6 : f32 to vector<8x16xf32>
    %25 = arith.select %23, %0, %24 : vector<8x16xi1>, vector<8x16xf32>
    %cst_7 = arith.constant dense<0.000000e+00> : vector<8xf32>
    %26 = vector.multi_reduction <add>, %25, %cst_7 [1] : vector<8x16xf32> to vector<8xf32>
    %27 = vector.shape_cast %26 : vector<8xf32> to vector<8x1xf32>
    %28 = arith.addf %2, %8 : vector<8x1xf32>
    %29 = arith.mulf %14, %21 : vector<8x1xf32>
    %cst_8 = arith.constant 1.000000e+00 : f32
    %30 = vector.broadcast %cst_8 : f32 to vector<8x1xf32>
    %31 = arith.subf %30, %14 : vector<8x1xf32>
    %32 = arith.mulf %31, %27 : vector<8x1xf32>
    %33 = arith.addf %29, %32 : vector<8x1xf32>
    %34 = arith.subf %28, %33 : vector<8x1xf32>
    %35 = tpu.iota {dimensions = array<i32: 0>} : vector<8x1xi32>
    %c8_i32 = arith.constant 8 : i32
    %36 = arith.muli %arg0, %c8_i32 : i32
    %37 = vector.broadcast %36 : i32 to vector<8x1xi32>
    %38 = arith.addi %35, %37 : vector<8x1xi32>
    %c8_i32_9 = arith.constant 8 : i32
    %39 = vector.broadcast %c8_i32_9 : i32 to vector<8x1xi32>
    %40 = arith.cmpi slt, %38, %39 : vector<8x1xi32>
    %cst_10 = arith.constant 0.000000e+00 : f32
    %41 = vector.broadcast %cst_10 : f32 to vector<8x1xf32>
    %42 = arith.select %40, %34, %41 : vector<8x1xi1>, vector<8x1xf32>
    %43 = vector.shape_cast %42 : vector<8x1xf32> to vector<1x8x1xf32>
    %cst_11 = arith.constant dense<0.000000e+00> : vector<1xf32>
    %44 = vector.multi_reduction <add>, %43, %cst_11 [1, 2] : vector<1x8x1xf32> to vector<1xf32>
    %45 = vector.shape_cast %44 : vector<1xf32> to vector<1x1x1xf32>
    %46 = vector.extract %45[0, 0, 0] : f32 from vector<1x1x1xf32>
    %47 = vector.broadcast %46 : f32 to vector<1x1xf32>
    %48 = vector.shape_cast %47 : vector<1x1xf32> to vector<1x1xf32>
    %49 = vector.broadcast %48 : vector<1x1xf32> to vector<8x128xf32>
    %c0_12 = arith.constant 0 : index
    %c0_13 = arith.constant 0 : index
    %50 = vector.load %arg3[%c0_12, %c0_13] : memref<8x128xf32, #tpu.memory_space<vmem>>, vector<8x128xf32>
    tpu.vector_store %arg3[%c0_12, %c0_13], %49 {strides = array<i32>} : memref<8x128xf32, #tpu.memory_space<vmem>>, vector<8x128xf32>,
    return
  }
  func.func @transform_0(%arg0: i32) -> (i32, i32) {
    %c0_i32 = arith.constant 0 : i32
    %c0_i32_0 = arith.constant 0 : i32
    return %arg0, %c0_i32 : i32, i32
  }
  func.func @transform_1(%arg0: i32) -> (i32, i32) {
    %c0_i32 = arith.constant 0 : i32
    %c0_i32_0 = arith.constant 0 : i32
    return %arg0, %c0_i32 : i32, i32
  }
  func.func @transform_2(%arg0: i32) -> (i32, i32) {
    %c0_i32 = arith.constant 0 : i32
    %c0_i32_0 = arith.constant 0 : i32
    return %arg0, %c0_i32 : i32, i32
  }
}

</mosaic_0001>

<llo_original>
// kernel: mixup_loss.1
$region0: #{mixup_loss.1}
  #allocation0 [shape = 'u32[]', space=smem, size = 0x4, offset = 0x4, fixed_abs, tag = 'smem constant byte address 0x4 - core index']
  #allocation1 [shape = 'u32[144,128]{1,0:T(1,128)}', space=vmem, size = 0x12000, scoped, tag = 'internal scratch']
  %s0 = inlined_call_operand.vmem [shape: f32[8,16], index: 0, kind: input, shape index: {}]
  %s1 = inlined_call_operand.vmem [shape: f32[8,3], index: 1, kind: input, shape index: {}]
  %s2 = inlined_call_operand.vmem [shape: f32[8,128], index: 2, kind: output, shape index: {}]
  %s3 = sld [smem:[#allocation0]]
  $region18: #{mixup_loss.1} parent=0
    _
  %s5 = ssub.s32 1, %s3
  %s6 = scalar_select 0, %s5, %s3
  // Predicated region
  $region2: #{mixup_loss.1} parent=0 // pred_check
    _
  $region3: #{mixup_loss.1} parent=0 // pred_check_branch
    %8 = sbr.rel (0) target = $region5
  $region4: #{mixup_loss.1} parent=0 // pred_region
    _
  $region5: #{mixup_loss.1} parent=0 // pred_fallthru
    _
  // Predicated region
  $region6: #{mixup_loss.1} parent=0 // pred_check
    _
  $region7: #{mixup_loss.1} parent=0 // pred_check_branch
    %10 = sbr.rel (0) target = $region9
  $region8: #{mixup_loss.1} parent=0 // pred_region
    _
  $region9: #{mixup_loss.1} parent=0 // pred_fallthru
    _
  %v11 = vld [vmem:[%s0] sm:$0xff]
  %vm12 = vcmask 130048
  %v13 = vsel %vm12, %v11, -inf
  %14 = vmax.xlane.f32.xlu0 %v13
  %v15 = vpop.xlane.xlu0 %14
  %v16 = vsub.f32 %v11, %v15
  %v17 = vmul.f32 %v16, 1.442695
  %v18 = vpow.pop %v17
  %v19 = vsel %vm12, %v18, 0.0
  %20 = vadd.xlane.f32.xlu0 %v19
  %v21 = vpop.xlane.xlu0 %20
  %v22 = vlog2.pop %v21
  %v23 = vmul.f32 %v22, 0.6931472
  %v24 = vld [vmem:[%s1] sm:$0xff]
  %v25 = vcvt.f32.s32.to.zero.pseudo %v24
  %v26 = vlaneseq
  %v27 = vand.u32 %v26, 127
  %28 = vset.pattern.permute.xlu0 0
  %29 = vperm.xlu0 %28, %v25
  %v30 = vpop.permute.xlu0 %29
  %vm31 = vcmp.eq.s32.totalorder %v27, %v30
  %v32 = vsel %vm31, %v11, 0.0
  %v33 = vsel %vm12, %v32, 0.0
  %34 = vadd.xlane.f32.xlu0 %v33
  %v35 = vpop.xlane.xlu0 %34
  %36 = vset.pattern.permute.xlu0 1
  %37 = vperm.xlu0 %36, %v25
  %v38 = vpop.permute.xlu0 %37
  %vm39 = vcmp.eq.s32.totalorder %v27, %v38
  %v40 = vsel %vm39, %v11, 0.0
  %v41 = vsel %vm12, %v40, 0.0
  %42 = vadd.xlane.f32.xlu0 %v41
  %v43 = vpop.xlane.xlu0 %42
  %v44 = vadd.f32 %v15, %v23
  %v45 = vmul.f32 %v24, %v35
  %v46 = vsub.f32 1.0, %v24
  %v47 = vmul.f32 %v46, %v43
  %v48 = vadd.f32 %v45, %v47
  %v49 = vsub.f32 %v44, %v48
  %v50 = vlaneseq
  %v51 = vshrl.u32 %v50, 7
  %s52 = smul.u32 0, 8
  %v53 = vstv %s52
  %v54 = vadd.s32 %v51, %v53
  %vm55 = vcmp.lt.s32.totalorder %v54, 8
  %v56 = vsel %vm55, %v49, 0.0
  %58 = vrot.lane.b32.xlu0 %v56, 126
  %v59 = vpop.permute.xlu0 %58
  %vm61 = vcmask 7168
  %v62 = vsel %vm61, %v59, 0.0
  %63 = vadd.xlane.f32.xlu0 %v62
  %v64 = vpop.xlane.xlu0 %63
  %v65 = vrot.slane %v64, 4
  %v66 = vadd.f32 %v64, %v65
  %v67 = vrot.slane %v66, 2
  %v68 = vadd.f32 %v66, %v67
  %v69 = vrot.slane %v68, 1
  %v70 = vadd.f32 %v68, %v69
  %s71 = vtos %v70
  %v72 = vstv %s71
  %73 = vst [vmem:[%s2] sm:$0xff] %v72
  // Predicated region
  $region10: #{mixup_loss.1} parent=0 // pred_check
    _
  $region11: #{mixup_loss.1} parent=0 // pred_check_branch
    %75 = sbr.rel (0) target = $region13
  $region12: #{mixup_loss.1} parent=0 // pred_region
    _
  $region13: #{mixup_loss.1} parent=0 // pred_fallthru
    _
  // Predicated region
  $region14: #{mixup_loss.1} parent=0 // pred_check
    _
  $region15: #{mixup_loss.1} parent=0 // pred_check_branch
    %77 = sbr.rel (0) target = $region17
  $region16: #{mixup_loss.1} parent=0 // pred_region
    _
  $region17: #{mixup_loss.1} parent=0 // pred_fallthru
    _

</llo_original>
